<compile_context>
chip_gen: v5e
topology: v5e:2x2
jax: 0.10.0
libtpu: 0.0.40
codegen_flags: <defaults>
</compile_context>

<pallas_src>
import jax
import jax.numpy as jnp
from jax import lax
from jax.experimental import pallas as pl
from jax.experimental.pallas import tpu as pltpu


def _round_up(v, m):
    return ((v + m - 1) // m) * m


def _cosine_linear_kernel(x_ref, w_ref, o_ref, inv_x_ref):
    """One grid step: one (tile_b) batch tile against one (tile_n) weight tile.

    x_ref:     (TB, D)   raw input rows (upcast to f32 in-kernel)
    w_ref:     (TN, D)   raw weight rows (upcast to f32 in-kernel)
    o_ref:     (TB, TN)  output tile
    inv_x_ref: (TB, 1)   VMEM scratch: 1 / max(||x_row||, eps), computed once
                         per B-tile (at the first N step) and reused.
    """
    eps = jnp.float32(1e-12)
    eps_sq = jnp.float32(1e-24)  # eps**2; rsqrt(max(s, eps^2)) == 1/max(sqrt(s), eps)

    # Hoisted x normalization: only at the first step along the N axis.
    @pl.when(pl.program_id(1) == 0)
    def _():
        xs = x_ref[...].astype(jnp.float32)
        x_sumsq = jnp.sum(xs * xs, axis=-1, keepdims=True)          # (TB, 1)
        inv_x_ref[...] = lax.rsqrt(jnp.maximum(x_sumsq, eps_sq))    # EUP rsqrt

    # Weight tile: fold L2 normalization into a single row scale (rsqrt + mul).
    w = w_ref[...].astype(jnp.float32)
    w_sumsq = jnp.sum(w * w, axis=-1, keepdims=True)                # (TN, 1)
    inv_w = lax.rsqrt(jnp.maximum(w_sumsq, eps_sq))                 # (TN, 1)
    w_n = w * inv_w                                                 # (TN, D)

    # (TB, D) x (TN, D) contracting on D -> (TB, TN); f32 accumulation on MXU.
    out = lax.dot_general(
        x_ref[...].astype(jnp.float32), w_n,
        dimension_numbers=(((1,), (1,)), ((), ())),
        preferred_element_type=jnp.float32)

    # Apply the cached per-row inverse norms of x as an output row scale.
    o_ref[...] = (out * inv_x_ref[...]).astype(o_ref.dtype)


def softmax_classifier_forward(x, weight, *, tile_b=128, tile_n=256):
    """Pallas implementation of SoftmaxClassifier.forward.

    x:      (B, D)  float32 / bfloat16
    weight: (N, D)  float32 / bfloat16 (bf16 halves the HBM roofline term)
    returns (B, N)  float32
    """
    B, D = x.shape
    N, D2 = weight.shape
    assert D == D2, "input_dim mismatch between x and weight"
    assert tile_b % 8 == 0, "tile_b must be a multiple of 8 (sublanes)"
    assert tile_n % 128 == 0, "tile_n must be a multiple of 128 (lanes)"

    # Effective tiles (cap at padded problem size, keep HW alignment).
    tb = min(tile_b, _round_up(B, 8))
    tn = min(tile_n, _round_up(N, 128))
    Bp = _round_up(B, tb)
    Np = _round_up(N, tn)

    # Pad ragged edges instead of constraining tile choice (padded rows are
    # zero; zero rows stay zero through the eps-clamped normalization).
    if Bp != B:
        x = jnp.pad(x, ((0, Bp - B), (0, 0)))
    if Np != N:
        weight = jnp.pad(weight, ((0, Np - N), (0, 0)))

    grid = (Bp // tb, Np // tn)

    # Explicit VMEM budget (double-buffered x/w/out blocks + normalized-weight
    # temp + scratch), with margin; keeps the 2-deep pipeline intact on v7x's
    # 64 MiB while never requesting more than is available there.
    vmem_need = 4 * (2 * tb * D + 3 * tn * D + 2 * tb * tn + 2 * tb * 128)
    vmem_limit = int(min(64 * 1024 * 1024, max(16 * 1024 * 1024, 2 * vmem_need)))

    out_padded = pl.pallas_call(
        _cosine_linear_kernel,
        out_shape=jax.ShapeDtypeStruct((Bp, Np), jnp.float32),
        grid_spec=pltpu.PrefetchScalarGridSpec(
            num_scalar_prefetch=0,
            grid=grid,
            in_specs=[
                # x tile: constant along the inner N axis -> fetched once per i.
                pl.BlockSpec((tb, D), lambda i, j: (i, 0)),
                # weight tile: streams along the N axis.
                pl.BlockSpec((tn, D), lambda i, j: (j, 0)),
            ],
            out_specs=pl.BlockSpec((tb, tn), lambda i, j: (i, j)),
            scratch_shapes=[pltpu.VMEM((tb, 1), jnp.float32)],
        ),
        compiler_params=pltpu.CompilerParams(
            # B axis parallel (megacore-shardable); N axis must be "arbitrary"
            # because the inv_x scratch is initialized at pid_n == 0 and
            # carried across the N steps of each B tile.
            dimension_semantics=("parallel", "arbitrary"),
            vmem_limit_bytes=vmem_limit,
        ),
    )(x, weight)

    if (Bp, Np) != (B, N):
        out_padded = out_padded[:B, :N]
    return out_padded


def _reference(x, weight, eps=1e-12):
    xn = x / jnp.maximum(jnp.linalg.norm(x, axis=1, keepdims=True), eps)
    wn = weight / jnp.maximum(jnp.linalg.norm(weight, axis=1, keepdims=True), eps)
    return xn @ wn.T


if __name__ == "__main__":
    # Small shapes consistent with the module (input_dim=D, out_neurons=N).
    # N=500 deliberately exercises the pad-to-tile path (tile_n=256 -> Np=512).
    B, D, N = 16, 256, 500

    key = jax.random.PRNGKey(0)
    kx, kw = jax.random.split(key)

    x = jax.random.normal(kx, (B, D), dtype=jnp.float32)

    # Deterministic Xavier-uniform init of weight (out_neurons, input_dim):
    # bound = sqrt(6 / (fan_in + fan_out)) = sqrt(6 / (D + N))
    bound = (6.0 / (D + N)) ** 0.5
    weight = jax.random.uniform(kw, (N, D), dtype=jnp.float32,
                                minval=-bound, maxval=bound)

    out = softmax_classifier_forward(x, weight)
    out = jax.block_until_ready(out)

    ref = _reference(x, weight)
    assert out.shape == (B, N)
    assert jnp.allclose(out, ref, atol=1e-5, rtol=1e-5), "mismatch vs reference"

    print("KERNEL_OK")
</pallas_src>

<mosaic_0001>
module attributes {stable_mosaic.version = 11 : i64} {
  func.func @_cosine_linear_kernel(%arg0: i32, %arg1: i32, %arg2: memref<16x256xf32, #tpu.memory_space<vmem>>, %arg3: memref<256x256xf32, #tpu.memory_space<vmem>>, %arg4: memref<16x256xf32, #tpu.memory_space<vmem>>, %arg5: memref<16x1xf32, #tpu.memory_space<vmem>>) attributes {dimension_semantics = [#tpu.dimension_semantics<parallel>, #tpu.dimension_semantics<arbitrary>], iteration_bounds = array<i64: 1, 2>, scalar_prefetch = 0 : i64, scratch_operands = 1 : i64, tpu.core_type = #tpu.core_type<tc>, window_params = [{transform_indices = @transform_0, window_bounds = array<i64: 16, 256>}, {transform_indices = @transform_1, window_bounds = array<i64: 256, 256>}, {transform_indices = @transform_2, window_bounds = array<i64: 16, 256>}]} {
    %c0_i32 = arith.constant 0 : i32
    %0 = arith.cmpi eq, %arg1, %c0_i32 : i32
    %1 = arith.extui %0 : i1 to i32
    %cst = arith.constant 1.000000e-24 : f32
    %c0_i32_0 = arith.constant 0 : i32
    %2 = arith.cmpi ne, %1, %c0_i32_0 : i32
    scf.if %2 {
      %c0_11 = arith.constant 0 : index
      %c0_12 = arith.constant 0 : index
      %18 = vector.load %arg2[%c0_11, %c0_12] : memref<16x256xf32, #tpu.memory_space<vmem>>, vector<16x256xf32>
      %19 = arith.mulf %18, %18 : vector<16x256xf32>
      %cst_13 = arith.constant dense<0.000000e+00> : vector<16xf32>
      %20 = vector.multi_reduction <add>, %19, %cst_13 [1] : vector<16x256xf32> to vector<16xf32>
      %21 = vector.shape_cast %20 : vector<16xf32> to vector<16x1xf32>
      %22 = vector.broadcast %cst : f32 to vector<16x1xf32>
      %23 = arith.maximumf %21, %22 : vector<16x1xf32>
      %24 = math.rsqrt %23 : vector<16x1xf32>
      %c0_14 = arith.constant 0 : index
      %c0_15 = arith.constant 0 : index
      %25 = vector.load %arg5[%c0_14, %c0_15] : memref<16x1xf32, #tpu.memory_space<vmem>>, vector<16x1xf32>
      tpu.vector_store %arg5[%c0_14, %c0_15], %24 {strides = array<i32>} : memref<16x1xf32, #tpu.memory_space<vmem>>, vector<16x1xf32>,
    } else {
    }
    %c0 = arith.constant 0 : index
    %c0_1 = arith.constant 0 : index
    %3 = vector.load %arg3[%c0, %c0_1] : memref<256x256xf32, #tpu.memory_space<vmem>>, vector<256x256xf32>
    %4 = arith.mulf %3, %3 : vector<256x256xf32>
    %cst_2 = arith.constant dense<0.000000e+00> : vector<256xf32>
    %5 = vector.multi_reduction <add>, %4, %cst_2 [1] : vector<256x256xf32> to vector<256xf32>
    %6 = vector.shape_cast %5 : vector<256xf32> to vector<256x1xf32>
    %cst_3 = arith.constant 1.000000e-24 : f32
    %7 = vector.broadcast %cst_3 : f32 to vector<256x1xf32>
    %8 = arith.maximumf %6, %7 : vector<256x1xf32>
    %9 = math.rsqrt %8 : vector<256x1xf32>
    %10 = vector.broadcast %9 : vector<256x1xf32> to vector<256x256xf32>
    %11 = arith.mulf %3, %10 : vector<256x256xf32>
    %c0_4 = arith.constant 0 : index
    %c0_5 = arith.constant 0 : index
    %12 = vector.load %arg2[%c0_4, %c0_5] : memref<16x256xf32, #tpu.memory_space<vmem>>, vector<16x256xf32>
    %cst_6 = arith.constant dense<0.000000e+00> : vector<16x256xf32>
    %13 = tpu.matmul %12, %11, %cst_6 {dimension_numbers = #tpu.dot_dimension_numbers<[1], [1], [0], [0], [0, 0, 1, 0], [], []>} : vector<16x256xf32>, vector<256x256xf32>, vector<16x256xf32> -> vector<16x256xf32>
    %c0_7 = arith.constant 0 : index
    %c0_8 = arith.constant 0 : index
    %14 = vector.load %arg5[%c0_7, %c0_8] : memref<16x1xf32, #tpu.memory_space<vmem>>, vector<16x1xf32>
    %15 = vector.broadcast %14 : vector<16x1xf32> to vector<16x256xf32>
    %16 = arith.mulf %13, %15 : vector<16x256xf32>
    %c0_9 = arith.constant 0 : index
    %c0_10 = arith.constant 0 : index
    %17 = vector.load %arg4[%c0_9, %c0_10] : memref<16x256xf32, #tpu.memory_space<vmem>>, vector<16x256xf32>
    tpu.vector_store %arg4[%c0_9, %c0_10], %16 {strides = array<i32>} : memref<16x256xf32, #tpu.memory_space<vmem>>, vector<16x256xf32>,
    return
  }
  func.func @transform_0(%arg0: i32, %arg1: i32) -> (i32, i32) {
    %c0_i32 = arith.constant 0 : i32
    %c0_i32_0 = arith.constant 0 : i32
    return %arg0, %c0_i32 : i32, i32
  }
  func.func @transform_1(%arg0: i32, %arg1: i32) -> (i32, i32) {
    %c0_i32 = arith.constant 0 : i32
    %c0_i32_0 = arith.constant 0 : i32
    return %arg1, %c0_i32 : i32, i32
  }
  func.func @transform_2(%arg0: i32, %arg1: i32) -> (i32, i32) {
    %c0_i32 = arith.constant 0 : i32
    return %arg0, %arg1 : i32, i32
  }
}

</mosaic_0001>

<llo_original>
// kernel: tpu_custom_call.1
$region0: #{tpu_custom_call.1}
  #allocation0 [shape = 'u32[]', space=smem, size = 0x4, offset = 0x4, fixed_abs, tag = 'smem constant byte address 0x4 - core index']
  #allocation1 [shape = 'u32[72,128]{1,0:T(1,128)}', space=vmem, size = 0x9000, scoped, tag = 'internal scratch']
  #allocation2 [shape = 'f32[16,1]{1,0:T(8,128)}', space=vmem, size = 0x2000, scoped, tag = 'scratch operand']
  %s0 = inlined_call_operand.hbm [shape: f32[16,256], index: 0, kind: input, shape index: {}]
  %s1 = inlined_call_operand.hbm [shape: f32[512,256], index: 1, kind: input, shape index: {}]
  %s2 = inlined_call_operand.hbm [shape: f32[16,512], index: 2, kind: output, shape index: {}]
  %s3 = sld [smem:[#allocation0]]
  $region53: #{tpu_custom_call.1} parent=0
    _
  %s5 = ssub.s32 1, %s3
  %s6 = scalar_select 0, %s5, %s3
  $region1: #{tpu_custom_call.1} parent=0
    #allocation3 [shape = 'u8[16384]{0}', space=vmem, size = 0x4000, scoped, tag = 'input window, operand 0, single buffered']
    #allocation4 [shape = 's32[2]{0}', space=sflag, size = 0x8, scoped, tag = 'scoped memory for tpu_custom_call.1']
    #allocation5 [shape = 's32[2]{0}', space=sflag, size = 0x8, scoped, tag = 'scoped memory for tpu_custom_call.1']
    #allocation6 [shape = 'u8[524288]{0}', space=vmem, size = 0x80000, scoped, tag = 'input window, operand 1']
    #allocation7 [shape = 's32[2]{0}', space=sflag, size = 0x8, scoped, tag = 'scoped memory for tpu_custom_call.1']
    #allocation8 [shape = 'u8[32768]{0}', space=vmem, size = 0x8000, scoped, tag = 'output window, operand 0']
    %7 = vsyncpa [#allocation4], 0
    %8 = vsyncpa [#allocation7], 0
    %s9 = scalar_lea.sflag [#allocation7], 1
    %10 = vsyncpa %s9, 0
    %11 = vsyncpa [#allocation5], 0
    %s12 = scalar_lea.sflag [#allocation5], 1
    %13 = vsyncpa %s12, 0
    loop: start=0, step=1, limit=4
    $region2: #{tpu_custom_call.1} parent=1 // loop_pre_header
      _
    $region3: #{tpu_custom_call.1} parent=1 // loop_header
      %s15 = sphi 0, %s19
      %p16 = scmp.ge.s32.totalorder %s15, 4
      %s22 = sphi 0, %s34
      %s23 = sphi 0, %s30
      %s24 = sphi 0, %s22
      %s25 = sphi 0, %s23
      %s26 = sphi 0, %s24
      %s27 = sphi 0, %s25
      %s37 = sphi 0, %s39
      %s40 = sphi 0, %s37
      %s41 = sphi 0, %s40
      %s57 = sphi 0, %s41
      %s63 = sphi 0, %s65
      %s66 = sphi 0, %s63
      %s67 = sphi 0, %s66
      %s83 = sphi 0, %s67
      %s91 = sphi 0, %s93
      %s94 = sphi 0, %s91
      %s95 = sphi 0, %s94
      %s111 = sphi 0, %s95
    $region4: #{tpu_custom_call.1} parent=1 // loop_header_branch
      %18 = sbr.rel (%p16) target = $region8
    $region5: #{tpu_custom_call.1} parent=1 // loop_body
      %s20 = ssub.s32 %s15, 1
      %s21 = ssub.s32 %s15, 2
      %s28 = sadd.s32 1, %s23
      %p29 = scmp.ge.s32.totalorder %s28, 2
      %s30 = scalar_select %p29, 0, %s28
      %s31 = sadd.s32 1, %s22
      %s32 = scalar_select %p29, %s31, %s22
      %p33 = scmp.ge.s32.totalorder %s32, 1
      %s34 = scalar_select %p33, 0, %s32
      %s35 = ssub.s32 %s22, %s34
      %p36 = scmp.eq.s32.totalorder %s35, 0
      %s38 = sadd.s32 %s37, 1
      %s39 = scalar_select %p36, %s37, %s38
      %p42 = pneg %p36
      %p43 = scmp.eq.s32.totalorder %s15, 1
      %p44 = por %p42, %p43
      %p45 = scmp.ne.s32.totalorder %s37, %s40
      %p46 = scmp.eq.s32.totalorder %s15, 0
      %p47 = por %p45, %p46
      %p48 = scmp.ne.s32.totalorder %s37, %s40
      %p49 = scmp.eq.s32.totalorder %s20, 1
      %p50 = por %p48, %p49
      %p51 = scmp.ne.s32.totalorder %s40, %s41
      %p52 = scmp.eq.s32.totalorder %s20, 0
      %p53 = por %p51, %p52
      %p54 = scmp.ne.s32.totalorder %s40, %s41
      %p55 = scmp.eq.s32.totalorder %s21, 1
      %p56 = por %p54, %p55
      %p58 = scmp.ne.s32.totalorder %s41, %s57
      %p59 = scmp.eq.s32.totalorder %s21, 0
      %p60 = por %p58, %p59
      %s61 = ssub.s32 %s23, %s30
      %p62 = scmp.eq.s32.totalorder %s61, 0
      %s64 = sadd.s32 %s63, 1
      %s65 = scalar_select %p62, %s63, %s64
      %p68 = pneg %p62
      %p69 = scmp.eq.s32.totalorder %s15, 1
      %p70 = por %p68, %p69
      %p71 = scmp.ne.s32.totalorder %s63, %s66
      %p72 = scmp.eq.s32.totalorder %s15, 0
      %p73 = por %p71, %p72
      %p74 = scmp.ne.s32.totalorder %s63, %s66
      %p75 = scmp.eq.s32.totalorder %s20, 1
      %p76 = por %p74, %p75
      %p77 = scmp.ne.s32.totalorder %s66, %s67
      %p78 = scmp.eq.s32.totalorder %s20, 0
      %p79 = por %p77, %p78
      %p80 = scmp.ne.s32.totalorder %s66, %s67
      %p81 = scmp.eq.s32.totalorder %s21, 1
      %p82 = por %p80, %p81
      %p84 = scmp.ne.s32.totalorder %s67, %s83
      %p85 = scmp.eq.s32.totalorder %s21, 0
      %p86 = por %p84, %p85
      %s87 = ssub.s32 %s22, %s34
      %s88 = ssub.s32 %s23, %s30
      %s89 = sor.u32 %s87, %s88
      %p90 = scmp.eq.s32.totalorder %s89, 0
      %s92 = sadd.s32 %s91, 1
      %s93 = scalar_select %p90, %s91, %s92
      %p96 = pneg %p90
      %p97 = scmp.eq.s32.totalorder %s15, 1
      %p98 = por %p96, %p97
      %p99 = scmp.ne.s32.totalorder %s91, %s94
      %p100 = scmp.eq.s32.totalorder %s15, 0
      %p101 = por %p99, %p100
      %p102 = scmp.ne.s32.totalorder %s91, %s94
      %p103 = scmp.eq.s32.totalorder %s20, 1
      %p104 = por %p102, %p103
      %p105 = scmp.ne.s32.totalorder %s94, %s95
      %p106 = scmp.eq.s32.totalorder %s20, 0
      %p107 = por %p105, %p106
      %p108 = scmp.ne.s32.totalorder %s94, %s95
      %p109 = scmp.eq.s32.totalorder %s21, 1
      %p110 = por %p108, %p109
      %p112 = scmp.ne.s32.totalorder %s95, %s111
      %p113 = scmp.eq.s32.totalorder %s21, 0
      %p114 = por %p112, %p113
      %p115 = scmp.le.s32.totalorder 1, %s15
      %p116 = scmp.lt.s32.totalorder %s15, 3
      %p117 = pnand %p115, %p116
      %p118 = pneg %p117
      // Predicated region
      $region9: #{tpu_custom_call.1} parent=5 // pred_check
        _
      $region10: #{tpu_custom_call.1} parent=5 // pred_check_branch
        %120 = sbr.rel (%p117) target = $region12
      $region11: #{tpu_custom_call.1} parent=5 // pred_region
        %s121 = ssub.s32 %s15, 1
        // Predicated region
        $region13: #{tpu_custom_call.1} parent=11 // pred_check
          %p122 = pneg %p53
        $region14: #{tpu_custom_call.1} parent=11 // pred_check_branch
          %124 = sbr.rel (%p122) target = $region16
        $region15: #{tpu_custom_call.1} parent=11 // pred_region
          %s125 = smul.u32 2, %s24
          %127 = vsyncadd [#allocation4], 0
          %s128 = smul.addr %s125, 2
          %s129 = smul.addr %s128, 8
          %s130 = scalar_lea.hbm %s0, %s129
          %s131 = sshll.u32 %s130, 4
          %s132 = int_to_ptr.hbm [resolvable:$true] %s131
          %s133 = sshll.u32 [#allocation3], 4
          %s134 = int_to_ptr.vmem [resolvable:$true] %s133
          %139 = dma.hbm_to_vmem [thread:$0]  %s132, 512, %s134, [#allocation4], 256, 256, 16
        $region16: #{tpu_custom_call.1} parent=11 // pred_fallthru
          _
      $region12: #{tpu_custom_call.1} parent=5 // pred_fallthru
        _
      %p140 = scmp.lt.s32.totalorder %s15, 2
      // Predicated region
      $region17: #{tpu_custom_call.1} parent=5 // pred_check
        %p141 = pneg %p140
      $region18: #{tpu_custom_call.1} parent=5 // pred_check_branch
        %143 = sbr.rel (%p141) target = $region20
      $region19: #{tpu_custom_call.1} parent=5 // pred_region
        // Predicated region
        $region21: #{tpu_custom_call.1} parent=19 // pred_check
          %p144 = pneg %p73
        $region22: #{tpu_custom_call.1} parent=19 // pred_check_branch
          %146 = sbr.rel (%p144) target = $region24
        $region23: #{tpu_custom_call.1} parent=19 // pred_region
          %s147 = sand.u32 %s63, 1
          %s148 = scalar_lea.sflag [#allocation7], %s147
          %s149 = sand.u32 %s63, 1
          %s150 = smul.addr %s149, 512
          %s151 = scalar_lea.vmem [#allocation6], %s150
          %s152 = smul.u32 32, %s23
          %154 = vsyncadd %s148, 0
          %s155 = smul.addr %s152, 2
          %s156 = smul.addr %s155, 8
          %s157 = scalar_lea.hbm %s1, %s156
          %s158 = sshll.u32 %s157, 4
          %s159 = int_to_ptr.hbm [resolvable:$true] %s158
          %s160 = sshll.u32 %s151, 4
          %s161 = int_to_ptr.vmem [resolvable:$true] %s160
          %166 = dma.hbm_to_vmem [thread:$0]  %s159, 8192, %s161, %s148, 256, 256, 16
        $region24: #{tpu_custom_call.1} parent=19 // pred_fallthru
          _
      $region20: #{tpu_custom_call.1} parent=5 // pred_fallthru
        _
      %p167 = scmp.le.s32.totalorder 1, %s15
      %p168 = scmp.lt.s32.totalorder %s15, 3
      %p169 = pnand %p167, %p168
      %p170 = pneg %p169
      // Predicated region
      $region25: #{tpu_custom_call.1} parent=5 // pred_check
        _
      $region26: #{tpu_custom_call.1} parent=5 // pred_check_branch
        %172 = sbr.rel (%p169) target = $region28
      $region27: #{tpu_custom_call.1} parent=5 // pred_region
        %s173 = ssub.s32 %s15, 1
        // Predicated region
        $region29: #{tpu_custom_call.1} parent=27 // pred_check
          %p174 = pneg %p53
        $region30: #{tpu_custom_call.1} parent=27 // pred_check_branch
          %176 = sbr.rel (%p174) target = $region32
        $region31: #{tpu_custom_call.1} parent=27 // pred_region
          %178 = dma.done [#allocation4], 512
        $region32: #{tpu_custom_call.1} parent=27 // pred_fallthru
          _
        %s179 = sand.u32 %s66, 1
        %s180 = scalar_lea.sflag [#allocation7], %s179
        %s181 = sand.u32 %s66, 1
        %s182 = smul.addr %s181, 512
        %s183 = scalar_lea.vmem [#allocation6], %s182
        // Predicated region
        $region33: #{tpu_custom_call.1} parent=27 // pred_check
          %p184 = pneg %p79
        $region34: #{tpu_custom_call.1} parent=27 // pred_check_branch
          %186 = sbr.rel (%p184) target = $region36
        $region35: #{tpu_custom_call.1} parent=27 // pred_region
          %188 = dma.done %s180, 8192
        $region36: #{tpu_custom_call.1} parent=27 // pred_fallthru
          _
        %p189 = pneg %p53
        %p190 = pneg %p50
        %s191 = sand.u32 %s66, 1
        %s192 = scalar_lea.sflag [#allocation7], %s191
        %s193 = sand.u32 %s66, 1
        %s194 = smul.addr %s193, 512
        %s195 = scalar_lea.vmem [#allocation6], %s194
        %p196 = pneg %p79
        %p197 = pneg %p76
        %p198 = pneg %p107
        %p199 = pneg %p104
        %s200 = sand.u32 %s94, 1
        %s201 = scalar_lea.sflag [#allocation5], %s200
        %s202 = sand.u32 %s94, 1
        %s203 = smul.addr %s202, 32
        %s204 = scalar_lea.vmem [#allocation8], %s203
        %s205 = smul.u32 2, %s24
        %s206 = smul.u32 32, %s25
        %s207 = smul.u32 2, %s24
        %s208 = smul.u32 2, %s25
        %p209 = scmp.eq.s32.totalorder %s25, 0
        // Predicated region
        $region37: #{tpu_custom_call.1} parent=27 // pred_check
          %p210 = pneg %p209
        $region38: #{tpu_custom_call.1} parent=27 // pred_check_branch
          %212 = sbr.rel (%p210) target = $region40
        $region39: #{tpu_custom_call.1} parent=27 // pred_region
          %v213 = vld [vmem:[#allocation3] sm:$0xff]
          %v214 = vld [vmem:[#allocation3 + $0x8] sm:$0xff]
          %v215 = vld [vmem:[#allocation3 + $0x10] sm:$0xff]
          %v216 = vld [vmem:[#allocation3 + $0x18] sm:$0xff]
          %v217 = vmul.f32 %v213, %v213
          %v218 = vmul.f32 %v214, %v214
          %v219 = vmul.f32 %v215, %v215
          %v220 = vmul.f32 %v216, %v216
          %v221 = vadd.f32 %v217, %v218
          %222 = vadd.xlane.f32.xlu0 %v221
          %v223 = vpop.xlane.xlu0 %222
          %v224 = vadd.f32 %v219, %v220
          %225 = vadd.xlane.f32.xlu0 %v224
          %v226 = vpop.xlane.xlu0 %225
          %v227 = vmax.f32 %v223, 1e-24
          %v228 = vmax.f32 %v226, 1e-24
          %v229 = vrsqrt.pop %v227
          %v230 = vmul.f32 %v229, %v227
          %v231 = vmul.f32 %v230, %v229
          %v232 = vmul.f32 0.5, %v231
          %v233 = vsub.f32 1.5, %v232
          %v234 = vmul.f32 %v229, %v233
          %vm235 = vweird.f32 %v227
          %vm236 = vweird.f32 %v229
          %vm237 = vmor %vm235, %vm236
          %v238 = vsel %vm237, %v229, %v234
          %v239 = vrsqrt.pop %v228
          %v240 = vmul.f32 %v239, %v228
          %v241 = vmul.f32 %v240, %v239
          %v242 = vmul.f32 0.5, %v241
          %v243 = vsub.f32 1.5, %v242
          %v244 = vmul.f32 %v239, %v243
          %vm245 = vweird.f32 %v228
          %vm246 = vweird.f32 %v239
          %vm247 = vmor %vm245, %vm246
          %v248 = vsel %vm247, %v239, %v244
          %vm249 = vcmask 7168
          %250 = vst.msk [vmem:[#allocation2] sm:$0xff] %vm249, %v238
          %251 = vst.msk [vmem:[#allocation2 + $0x8] sm:$0xff] %vm249, %v248
        $region40: #{tpu_custom_call.1} parent=27 // pred_fallthru
          _
        %v252 = vld [vmem:[%s183] sm:$0xff]
        %v253 = vld [vmem:[%s183 + $0x8] sm:$0xff]
        %v254 = vld [vmem:[%s183 + $0x10] sm:$0xff]
        %v255 = vld [vmem:[%s183 + $0x18] sm:$0xff]
        %v256 = vld [vmem:[%s183 + $0x20] sm:$0xff]
        %v257 = vld [vmem:[%s183 + $0x28] sm:$0xff]
        %v258 = vld [vmem:[%s183 + $0x30] sm:$0xff]
        %v259 = vld [vmem:[%s183 + $0x38] sm:$0xff]
        %v260 = vld [vmem:[%s183 + $0x40] sm:$0xff]
        %v261 = vld [vmem:[%s183 + $0x48] sm:$0xff]
        %v262 = vld [vmem:[%s183 + $0x50] sm:$0xff]
        %v263 = vld [vmem:[%s183 + $0x58] sm:$0xff]
        %v264 = vld [vmem:[%s183 + $0x60] sm:$0xff]
        %v265 = vld [vmem:[%s183 + $0x68] sm:$0xff]
        %v266 = vld [vmem:[%s183 + $0x70] sm:$0xff]
        %v267 = vld [vmem:[%s183 + $0x78] sm:$0xff]
        %v268 = vld [vmem:[%s183 + $0x80] sm:$0xff]
        %v269 = vld [vmem:[%s183 + $0x88] sm:$0xff]
        %v270 = vld [vmem:[%s183 + $0x90] sm:$0xff]
        %v271 = vld [vmem:[%s183 + $0x98] sm:$0xff]
        %v272 = vld [vmem:[%s183 + $0xa0] sm:$0xff]
        %v273 = vld [vmem:[%s183 + $0xa8] sm:$0xff]
        %v274 = vld [vmem:[%s183 + $0xb0] sm:$0xff]
        %v275 = vld [vmem:[%s183 + $0xb8] sm:$0xff]
        %v276 = vld [vmem:[%s183 + $0xc0] sm:$0xff]
        %v277 = vld [vmem:[%s183 + $0xc8] sm:$0xff]
        %v278 = vld [vmem:[%s183 + $0xd0] sm:$0xff]
        %v279 = vld [vmem:[%s183 + $0xd8] sm:$0xff]
        %v280 = vld [vmem:[%s183 + $0xe0] sm:$0xff]
        %v281 = vld [vmem:[%s183 + $0xe8] sm:$0xff]
        %v282 = vld [vmem:[%s183 + $0xf0] sm:$0xff]
        %v283 = vld [vmem:[%s183 + $0xf8] sm:$0xff]
        %v284 = vld [vmem:[%s183 + $0x100] sm:$0xff]
        %v285 = vld [vmem:[%s183 + $0x108] sm:$0xff]
        %v286 = vld [vmem:[%s183 + $0x110] sm:$0xff]
        %v287 = vld [vmem:[%s183 + $0x118] sm:$0xff]
        %v288 = vld [vmem:[%s183 + $0x120] sm:$0xff]
        %v289 = vld [vmem:[%s183 + $0x128] sm:$0xff]
        %v290 = vld [vmem:[%s183 + $0x130] sm:$0xff]
        %v291 = vld [vmem:[%s183 + $0x138] sm:$0xff]
        %v292 = vld [vmem:[%s183 + $0x140] sm:$0xff]
        %v293 = vld [vmem:[%s183 + $0x148] sm:$0xff]
        %v294 = vld [vmem:[%s183 + $0x150] sm:$0xff]
        %v295 = vld [vmem:[%s183 + $0x158] sm:$0xff]
        %v296 = vld [vmem:[%s183 + $0x160] sm:$0xff]
        %v297 = vld [vmem:[%s183 + $0x168] sm:$0xff]
        %v298 = vld [vmem:[%s183 + $0x170] sm:$0xff]
        %v299 = vld [vmem:[%s183 + $0x178] sm:$0xff]
        %v300 = vld [vmem:[%s183 + $0x180] sm:$0xff]
        %v301 = vld [vmem:[%s183 + $0x188] sm:$0xff]
        %v302 = vld [vmem:[%s183 + $0x190] sm:$0xff]
        %v303 = vld [vmem:[%s183 + $0x198] sm:$0xff]
        %v304 = vld [vmem:[%s183 + $0x1a0] sm:$0xff]
        %v305 = vld [vmem:[%s183 + $0x1a8] sm:$0xff]
        %v306 = vld [vmem:[%s183 + $0x1b0] sm:$0xff]
        %v307 = vld [vmem:[%s183 + $0x1b8] sm:$0xff]
        %v308 = vld [vmem:[%s183 + $0x1c0] sm:$0xff]
        %v309 = vld [vmem:[%s183 + $0x1c8] sm:$0xff]
        %v310 = vld [vmem:[%s183 + $0x1d0] sm:$0xff]
        %v311 = vld [vmem:[%s183 + $0x1d8] sm:$0xff]
        %v312 = vld [vmem:[%s183 + $0x1e0] sm:$0xff]
        %v313 = vld [vmem:[%s183 + $0x1e8] sm:$0xff]
        %v314 = vld [vmem:[%s183 + $0x1f0] sm:$0xff]
        %v315 = vld [vmem:[%s183 + $0x1f8] sm:$0xff]
        %v316 = vmul.f32 %v252, %v252
        %v317 = vmul.f32 %v253, %v253
        %v318 = vmul.f32 %v254, %v254
        %v319 = vmul.f32 %v255, %v255
        %v320 = vmul.f32 %v256, %v256
        %v321 = vmul.f32 %v257, %v257
        %v322 = vmul.f32 %v258, %v258
        %v323 = vmul.f32 %v259, %v259
        %v324 = vmul.f32 %v260, %v260
        %v325 = vmul.f32 %v261, %v261
        %v326 = vmul.f32 %v262, %v262
        %v327 = vmul.f32 %v263, %v263
        %v328 = vmul.f32 %v264, %v264
        %v329 = vmul.f32 %v265, %v265
        %v330 = vmul.f32 %v266, %v266
        %v331 = vmul.f32 %v267, %v267
        %v332 = vmul.f32 %v268, %v268
        %v333 = vmul.f32 %v269, %v269
        %v334 = vmul.f32 %v270, %v270
        %v335 = vmul.f32 %v271, %v271
        %v336 = vmul.f32 %v272, %v272
        %v337 = vmul.f32 %v273, %v273
        %v338 = vmul.f32 %v274, %v274
        %v339 = vmul.f32 %v275, %v275
        %v340 = vmul.f32 %v276, %v276
        %v341 = vmul.f32 %v277, %v277
        %v342 = vmul.f32 %v278, %v278
        %v343 = vmul.f32 %v279, %v279
        %v344 = vmul.f32 %v280, %v280
        %v345 = vmul.f32 %v281, %v281
        %v346 = vmul.f32 %v282, %v282
        %v347 = vmul.f32 %v283, %v283
        %v348 = vmul.f32 %v284, %v284
        %v349 = vmul.f32 %v285, %v285
        %v350 = vmul.f32 %v286, %v286
        %v351 = vmul.f32 %v287, %v287
        %v352 = vmul.f32 %v288, %v288
        %v353 = vmul.f32 %v289, %v289
        %v354 = vmul.f32 %v290, %v290
        %v355 = vmul.f32 %v291, %v291
        %v356 = vmul.f32 %v292, %v292
        %v357 = vmul.f32 %v293, %v293
        %v358 = vmul.f32 %v294, %v294
        %v359 = vmul.f32 %v295, %v295
        %v360 = vmul.f32 %v296, %v296
        %v361 = vmul.f32 %v297, %v297
        %v362 = vmul.f32 %v298, %v298
        %v363 = vmul.f32 %v299, %v299
        %v364 = vmul.f32 %v300, %v300
        %v365 = vmul.f32 %v301, %v301
        %v366 = vmul.f32 %v302, %v302
        %v367 = vmul.f32 %v303, %v303
        %v368 = vmul.f32 %v304, %v304
        %v369 = vmul.f32 %v305, %v305
        %v370 = vmul.f32 %v306, %v306
        %v371 = vmul.f32 %v307, %v307
        %v372 = vmul.f32 %v308, %v308
        %v373 = vmul.f32 %v309, %v309
        %v374 = vmul.f32 %v310, %v310
        %v375 = vmul.f32 %v311, %v311
        %v376 = vmul.f32 %v312, %v312
        %v377 = vmul.f32 %v313, %v313
        %v378 = vmul.f32 %v314, %v314
        %v379 = vmul.f32 %v315, %v315
        %v380 = vadd.f32 %v316, %v317
        %381 = vadd.xlane.f32.xlu0 %v380
        %v382 = vpop.xlane.xlu0 %381
        %v383 = vadd.f32 %v318, %v319
        %384 = vadd.xlane.f32.xlu0 %v383
        %v385 = vpop.xlane.xlu0 %384
        %v386 = vadd.f32 %v320, %v321
        %387 = vadd.xlane.f32.xlu0 %v386
        %v388 = vpop.xlane.xlu0 %387
        %v389 = vadd.f32 %v322, %v323
        %390 = vadd.xlane.f32.xlu0 %v389
        %v391 = vpop.xlane.xlu0 %390
        %v392 = vadd.f32 %v324, %v325
        %393 = vadd.xlane.f32.xlu0 %v392
        %v394 = vpop.xlane.xlu0 %393
        %v395 = vadd.f32 %v326, %v327
        %396 = vadd.xlane.f32.xlu0 %v395
        %v397 = vpop.xlane.xlu0 %396
        %v398 = vadd.f32 %v328, %v329
        %399 = vadd.xlane.f32.xlu0 %v398
        %v400 = vpop.xlane.xlu0 %399
        %v401 = vadd.f32 %v330, %v331
        %402 = vadd.xlane.f32.xlu0 %v401
        %v403 = vpop.xlane.xlu0 %402
        %v404 = vadd.f32 %v332, %v333
        %405 = vadd.xlane.f32.xlu0 %v404
        %v406 = vpop.xlane.xlu0 %405
        %v407 = vadd.f32 %v334, %v335
        %408 = vadd.xlane.f32.xlu0 %v407
        %v409 = vpop.xlane.xlu0 %408
        %v410 = vadd.f32 %v336, %v337
        %411 = vadd.xlane.f32.xlu0 %v410
        %v412 = vpop.xlane.xlu0 %411
        %v413 = vadd.f32 %v338, %v339
        %414 = vadd.xlane.f32.xlu0 %v413
        %v415 = vpop.xlane.xlu0 %414
        %v416 = vadd.f32 %v340, %v341
        %417 = vadd.xlane.f32.xlu0 %v416
        %v418 = vpop.xlane.xlu0 %417
        %v419 = vadd.f32 %v342, %v343
        %420 = vadd.xlane.f32.xlu0 %v419
        %v421 = vpop.xlane.xlu0 %420
        %v422 = vadd.f32 %v344, %v345
        %423 = vadd.xlane.f32.xlu0 %v422
        %v424 = vpop.xlane.xlu0 %423
        %v425 = vadd.f32 %v346, %v347
        %426 = vadd.xlane.f32.xlu0 %v425
        %v427 = vpop.xlane.xlu0 %426
        %v428 = vadd.f32 %v348, %v349
        %429 = vadd.xlane.f32.xlu0 %v428
        %v430 = vpop.xlane.xlu0 %429
        %v431 = vadd.f32 %v350, %v351
        %432 = vadd.xlane.f32.xlu0 %v431
        %v433 = vpop.xlane.xlu0 %432
        %v434 = vadd.f32 %v352, %v353
        %435 = vadd.xlane.f32.xlu0 %v434
        %v436 = vpop.xlane.xlu0 %435
        %v437 = vadd.f32 %v354, %v355
        %438 = vadd.xlane.f32.xlu0 %v437
        %v439 = vpop.xlane.xlu0 %438
        %v440 = vadd.f32 %v356, %v357
        %441 = vadd.xlane.f32.xlu0 %v440
        %v442 = vpop.xlane.xlu0 %441
        %v443 = vadd.f32 %v358, %v359
        %444 = vadd.xlane.f32.xlu0 %v443
        %v445 = vpop.xlane.xlu0 %444
        %v446 = vadd.f32 %v360, %v361
        %447 = vadd.xlane.f32.xlu0 %v446
        %v448 = vpop.xlane.xlu0 %447
        %v449 = vadd.f32 %v362, %v363
        %450 = vadd.xlane.f32.xlu0 %v449
        %v451 = vpop.xlane.xlu0 %450
        %v452 = vadd.f32 %v364, %v365
        %453 = vadd.xlane.f32.xlu0 %v452
        %v454 = vpop.xlane.xlu0 %453
        %v455 = vadd.f32 %v366, %v367
        %456 = vadd.xlane.f32.xlu0 %v455
        %v457 = vpop.xlane.xlu0 %456
        %v458 = vadd.f32 %v368, %v369
        %459 = vadd.xlane.f32.xlu0 %v458
        %v460 = vpop.xlane.xlu0 %459
        %v461 = vadd.f32 %v370, %v371
        %462 = vadd.xlane.f32.xlu0 %v461
        %v463 = vpop.xlane.xlu0 %462
        %v464 = vadd.f32 %v372, %v373
        %465 = vadd.xlane.f32.xlu0 %v464
        %v466 = vpop.xlane.xlu0 %465
        %v467 = vadd.f32 %v374, %v375
        %468 = vadd.xlane.f32.xlu0 %v467
        %v469 = vpop.xlane.xlu0 %468
        %v470 = vadd.f32 %v376, %v377
        %471 = vadd.xlane.f32.xlu0 %v470
        %v472 = vpop.xlane.xlu0 %471
        %v473 = vadd.f32 %v378, %v379
        %474 = vadd.xlane.f32.xlu0 %v473
        %v475 = vpop.xlane.xlu0 %474
        %v476 = vmax.f32 %v382, 1e-24
        %v477 = vmax.f32 %v385, 1e-24
        %v478 = vmax.f32 %v388, 1e-24
        %v479 = vmax.f32 %v391, 1e-24
        %v480 = vmax.f32 %v394, 1e-24
        %v481 = vmax.f32 %v397, 1e-24
        %v482 = vmax.f32 %v400, 1e-24
        %v483 = vmax.f32 %v403, 1e-24
        %v484 = vmax.f32 %v406, 1e-24
        %v485 = vmax.f32 %v409, 1e-24
        %v486 = vmax.f32 %v412, 1e-24
        %v487 = vmax.f32 %v415, 1e-24
        %v488 = vmax.f32 %v418, 1e-24
        %v489 = vmax.f32 %v421, 1e-24
        %v490 = vmax.f32 %v424, 1e-24
        %v491 = vmax.f32 %v427, 1e-24
        %v492 = vmax.f32 %v430, 1e-24
        %v493 = vmax.f32 %v433, 1e-24
        %v494 = vmax.f32 %v436, 1e-24
        %v495 = vmax.f32 %v439, 1e-24
        %v496 = vmax.f32 %v442, 1e-24
        %v497 = vmax.f32 %v445, 1e-24
        %v498 = vmax.f32 %v448, 1e-24
        %v499 = vmax.f32 %v451, 1e-24
        %v500 = vmax.f32 %v454, 1e-24
        %v501 = vmax.f32 %v457, 1e-24
        %v502 = vmax.f32 %v460, 1e-24
        %v503 = vmax.f32 %v463, 1e-24
        %v504 = vmax.f32 %v466, 1e-24
        %v505 = vmax.f32 %v469, 1e-24
        %v506 = vmax.f32 %v472, 1e-24
        %v507 = vmax.f32 %v475, 1e-24
        %v508 = vrsqrt.pop %v476
        %v509 = vmul.f32 %v508, %v476
        %v510 = vmul.f32 %v509, %v508
        %v511 = vmul.f32 0.5, %v510
        %v512 = vsub.f32 1.5, %v511
        %v513 = vmul.f32 %v508, %v512
        %vm514 = vweird.f32 %v476
        %vm515 = vweird.f32 %v508
        %vm516 = vmor %vm514, %vm515
        %v517 = vsel %vm516, %v508, %v513
        %v518 = vrsqrt.pop %v477
        %v519 = vmul.f32 %v518, %v477
        %v520 = vmul.f32 %v519, %v518
        %v521 = vmul.f32 0.5, %v520
        %v522 = vsub.f32 1.5, %v521
        %v523 = vmul.f32 %v518, %v522
        %vm524 = vweird.f32 %v477
        %vm525 = vweird.f32 %v518
        %vm526 = vmor %vm524, %vm525
        %v527 = vsel %vm526, %v518, %v523
        %v528 = vrsqrt.pop %v478
        %v529 = vmul.f32 %v528, %v478
        %v530 = vmul.f32 %v529, %v528
        %v531 = vmul.f32 0.5, %v530
        %v532 = vsub.f32 1.5, %v531
        %v533 = vmul.f32 %v528, %v532
        %vm534 = vweird.f32 %v478
        %vm535 = vweird.f32 %v528
        %vm536 = vmor %vm534, %vm535
        %v537 = vsel %vm536, %v528, %v533
        %v538 = vrsqrt.pop %v479
        %v539 = vmul.f32 %v538, %v479
        %v540 = vmul.f32 %v539, %v538
        %v541 = vmul.f32 0.5, %v540
        %v542 = vsub.f32 1.5, %v541
        %v543 = vmul.f32 %v538, %v542
        %vm544 = vweird.f32 %v479
        %vm545 = vweird.f32 %v538
        %vm546 = vmor %vm544, %vm545
        %v547 = vsel %vm546, %v538, %v543
        %v548 = vrsqrt.pop %v480
        %v549 = vmul.f32 %v548, %v480
        %v550 = vmul.f32 %v549, %v548
        %v551 = vmul.f32 0.5, %v550
        %v552 = vsub.f32 1.5, %v551
        %v553 = vmul.f32 %v548, %v552
        %vm554 = vweird.f32 %v480
        %vm555 = vweird.f32 %v548
        %vm556 = vmor %vm554, %vm555
        %v557 = vsel %vm556, %v548, %v553
        %v558 = vrsqrt.pop %v481
        %v559 = vmul.f32 %v558, %v481
        %v560 = vmul.f32 %v559, %v558
        %v561 = vmul.f32 0.5, %v560
        %v562 = vsub.f32 1.5, %v561
        %v563 = vmul.f32 %v558, %v562
        %vm564 = vweird.f32 %v481
        %vm565 = vweird.f32 %v558
        %vm566 = vmor %vm564, %vm565
        %v567 = vsel %vm566, %v558, %v563
        %v568 = vrsqrt.pop %v482
        %v569 = vmul.f32 %v568, %v482
        %v570 = vmul.f32 %v569, %v568
        %v571 = vmul.f32 0.5, %v570
        %v572 = vsub.f32 1.5, %v571
        %v573 = vmul.f32 %v568, %v572
        %vm574 = vweird.f32 %v482
        %vm575 = vweird.f32 %v568
        %vm576 = vmor %vm574, %vm575
        %v577 = vsel %vm576, %v568, %v573
        %v578 = vrsqrt.pop %v483
        %v579 = vmul.f32 %v578, %v483
        %v580 = vmul.f32 %v579, %v578
        %v581 = vmul.f32 0.5, %v580
        %v582 = vsub.f32 1.5, %v581
        %v583 = vmul.f32 %v578, %v582
        %vm584 = vweird.f32 %v483
        %vm585 = vweird.f32 %v578
        %vm586 = vmor %vm584, %vm585
        %v587 = vsel %vm586, %v578, %v583
        %v588 = vrsqrt.pop %v484
        %v589 = vmul.f32 %v588, %v484
        %v590 = vmul.f32 %v589, %v588
        %v591 = vmul.f32 0.5, %v590
        %v592 = vsub.f32 1.5, %v591
        %v593 = vmul.f32 %v588, %v592
        %vm594 = vweird.f32 %v484
        %vm595 = vweird.f32 %v588
        %vm596 = vmor %vm594, %vm595
        %v597 = vsel %vm596, %v588, %v593
        %v598 = vrsqrt.pop %v485
        %v599 = vmul.f32 %v598, %v485
        %v600 = vmul.f32 %v599, %v598
        %v601 = vmul.f32 0.5, %v600
        %v602 = vsub.f32 1.5, %v601
        %v603 = vmul.f32 %v598, %v602
        %vm604 = vweird.f32 %v485
        %vm605 = vweird.f32 %v598
        %vm606 = vmor %vm604, %vm605
        %v607 = vsel %vm606, %v598, %v603
        %v608 = vrsqrt.pop %v486
        %v609 = vmul.f32 %v608, %v486
        %v610 = vmul.f32 %v609, %v608
        %v611 = vmul.f32 0.5, %v610
        %v612 = vsub.f32 1.5, %v611
        %v613 = vmul.f32 %v608, %v612
        %vm614 = vweird.f32 %v486
        %vm615 = vweird.f32 %v608
        %vm616 = vmor %vm614, %vm615
        %v617 = vsel %vm616, %v608, %v613
        %v618 = vrsqrt.pop %v487
        %v619 = vmul.f32 %v618, %v487
        %v620 = vmul.f32 %v619, %v618
        %v621 = vmul.f32 0.5, %v620
        %v622 = vsub.f32 1.5, %v621
        %v623 = vmul.f32 %v618, %v622
        %vm624 = vweird.f32 %v487
        %vm625 = vweird.f32 %v618
        %vm626 = vmor %vm624, %vm625
        %v627 = vsel %vm626, %v618, %v623
        %v628 = vrsqrt.pop %v488
        %v629 = vmul.f32 %v628, %v488
        %v630 = vmul.f32 %v629, %v628
        %v631 = vmul.f32 0.5, %v630
        %v632 = vsub.f32 1.5, %v631
        %v633 = vmul.f32 %v628, %v632
        %vm634 = vweird.f32 %v488
        %vm635 = vweird.f32 %v628
        %vm636 = vmor %vm634, %vm635
        %v637 = vsel %vm636, %v628, %v633
        %v638 = vrsqrt.pop %v489
        %v639 = vmul.f32 %v638, %v489
        %v640 = vmul.f32 %v639, %v638
        %v641 = vmul.f32 0.5, %v640
        %v642 = vsub.f32 1.5, %v641
        %v643 = vmul.f32 %v638, %v642
        %vm644 = vweird.f32 %v489
        %vm645 = vweird.f32 %v638
        %vm646 = vmor %vm644, %vm645
        %v647 = vsel %vm646, %v638, %v643
        %v648 = vrsqrt.pop %v490
        %v649 = vmul.f32 %v648, %v490
        %v650 = vmul.f32 %v649, %v648
        %v651 = vmul.f32 0.5, %v650
        %v652 = vsub.f32 1.5, %v651
        %v653 = vmul.f32 %v648, %v652
        %vm654 = vweird.f32 %v490
        %vm655 = vweird.f32 %v648
        %vm656 = vmor %vm654, %vm655
        %v657 = vsel %vm656, %v648, %v653
        %v658 = vrsqrt.pop %v491
        %v659 = vmul.f32 %v658, %v491
        %v660 = vmul.f32 %v659, %v658
        %v661 = vmul.f32 0.5, %v660
        %v662 = vsub.f32 1.5, %v661
        %v663 = vmul.f32 %v658, %v662
        %vm664 = vweird.f32 %v491
        %vm665 = vweird.f32 %v658
        %vm666 = vmor %vm664, %vm665
        %v667 = vsel %vm666, %v658, %v663
        %v668 = vrsqrt.pop %v492
        %v669 = vmul.f32 %v668, %v492
        %v670 = vmul.f32 %v669, %v668
        %v671 = vmul.f32 0.5, %v670
        %v672 = vsub.f32 1.5, %v671
        %v673 = vmul.f32 %v668, %v672
        %vm674 = vweird.f32 %v492
        %vm675 = vweird.f32 %v668
        %vm676 = vmor %vm674, %vm675
        %v677 = vsel %vm676, %v668, %v673
        %v678 = vrsqrt.pop %v493
        %v679 = vmul.f32 %v678, %v493
        %v680 = vmul.f32 %v679, %v678
        %v681 = vmul.f32 0.5, %v680
        %v682 = vsub.f32 1.5, %v681
        %v683 = vmul.f32 %v678, %v682
        %vm684 = vweird.f32 %v493
        %vm685 = vweird.f32 %v678
        %vm686 = vmor %vm684, %vm685
        %v687 = vsel %vm686, %v678, %v683
        %v688 = vrsqrt.pop %v494
        %v689 = vmul.f32 %v688, %v494
        %v690 = vmul.f32 %v689, %v688
        %v691 = vmul.f32 0.5, %v690
        %v692 = vsub.f32 1.5, %v691
        %v693 = vmul.f32 %v688, %v692
        %vm694 = vweird.f32 %v494
        %vm695 = vweird.f32 %v688
        %vm696 = vmor %vm694, %vm695
        %v697 = vsel %vm696, %v688, %v693
        %v698 = vrsqrt.pop %v495
        %v699 = vmul.f32 %v698, %v495
        %v700 = vmul.f32 %v699, %v698
        %v701 = vmul.f32 0.5, %v700
        %v702 = vsub.f32 1.5, %v701
        %v703 = vmul.f32 %v698, %v702
        %vm704 = vweird.f32 %v495
        %vm705 = vweird.f32 %v698
        %vm706 = vmor %vm704, %vm705
        %v707 = vsel %vm706, %v698, %v703
        %v708 = vrsqrt.pop %v496
        %v709 = vmul.f32 %v708, %v496
        %v710 = vmul.f32 %v709, %v708
        %v711 = vmul.f32 0.5, %v710
        %v712 = vsub.f32 1.5, %v711
        %v713 = vmul.f32 %v708, %v712
        %vm714 = vweird.f32 %v496
        %vm715 = vweird.f32 %v708
        %vm716 = vmor %vm714, %vm715
        %v717 = vsel %vm716, %v708, %v713
        %v718 = vrsqrt.pop %v497
        %v719 = vmul.f32 %v718, %v497
        %v720 = vmul.f32 %v719, %v718
        %v721 = vmul.f32 0.5, %v720
        %v722 = vsub.f32 1.5, %v721
        %v723 = vmul.f32 %v718, %v722
        %vm724 = vweird.f32 %v497
        %vm725 = vweird.f32 %v718
        %vm726 = vmor %vm724, %vm725
        %v727 = vsel %vm726, %v718, %v723
        %v728 = vrsqrt.pop %v498
        %v729 = vmul.f32 %v728, %v498
        %v730 = vmul.f32 %v729, %v728
        %v731 = vmul.f32 0.5, %v730
        %v732 = vsub.f32 1.5, %v731
        %v733 = vmul.f32 %v728, %v732
        %vm734 = vweird.f32 %v498
        %vm735 = vweird.f32 %v728
        %vm736 = vmor %vm734, %vm735
        %v737 = vsel %vm736, %v728, %v733
        %v738 = vrsqrt.pop %v499
        %v739 = vmul.f32 %v738, %v499
        %v740 = vmul.f32 %v739, %v738
        %v741 = vmul.f32 0.5, %v740
        %v742 = vsub.f32 1.5, %v741
        %v743 = vmul.f32 %v738, %v742
        %vm744 = vweird.f32 %v499
        %vm745 = vweird.f32 %v738
        %vm746 = vmor %vm744, %vm745
        %v747 = vsel %vm746, %v738, %v743
        %v748 = vrsqrt.pop %v500
        %v749 = vmul.f32 %v748, %v500
        %v750 = vmul.f32 %v749, %v748
        %v751 = vmul.f32 0.5, %v750
        %v752 = vsub.f32 1.5, %v751
        %v753 = vmul.f32 %v748, %v752
        %vm754 = vweird.f32 %v500
        %vm755 = vweird.f32 %v748
        %vm756 = vmor %vm754, %vm755
        %v757 = vsel %vm756, %v748, %v753
        %v758 = vrsqrt.pop %v501
        %v759 = vmul.f32 %v758, %v501
        %v760 = vmul.f32 %v759, %v758
        %v761 = vmul.f32 0.5, %v760
        %v762 = vsub.f32 1.5, %v761
        %v763 = vmul.f32 %v758, %v762
        %vm764 = vweird.f32 %v501
        %vm765 = vweird.f32 %v758
        %vm766 = vmor %vm764, %vm765
        %v767 = vsel %vm766, %v758, %v763
        %v768 = vrsqrt.pop %v502
        %v769 = vmul.f32 %v768, %v502
        %v770 = vmul.f32 %v769, %v768
        %v771 = vmul.f32 0.5, %v770
        %v772 = vsub.f32 1.5, %v771
        %v773 = vmul.f32 %v768, %v772
        %vm774 = vweird.f32 %v502
        %vm775 = vweird.f32 %v768
        %vm776 = vmor %vm774, %vm775
        %v777 = vsel %vm776, %v768, %v773
        %v778 = vrsqrt.pop %v503
        %v779 = vmul.f32 %v778, %v503
        %v780 = vmul.f32 %v779, %v778
        %v781 = vmul.f32 0.5, %v780
        %v782 = vsub.f32 1.5, %v781
        %v783 = vmul.f32 %v778, %v782
        %vm784 = vweird.f32 %v503
        %vm785 = vweird.f32 %v778
        %vm786 = vmor %vm784, %vm785
        %v787 = vsel %vm786, %v778, %v783
        %v788 = vrsqrt.pop %v504
        %v789 = vmul.f32 %v788, %v504
        %v790 = vmul.f32 %v789, %v788
        %v791 = vmul.f32 0.5, %v790
        %v792 = vsub.f32 1.5, %v791
        %v793 = vmul.f32 %v788, %v792
        %vm794 = vweird.f32 %v504
        %vm795 = vweird.f32 %v788
        %vm796 = vmor %vm794, %vm795
        %v797 = vsel %vm796, %v788, %v793
        %v798 = vrsqrt.pop %v505
        %v799 = vmul.f32 %v798, %v505
        %v800 = vmul.f32 %v799, %v798
        %v801 = vmul.f32 0.5, %v800
        %v802 = vsub.f32 1.5, %v801
        %v803 = vmul.f32 %v798, %v802
        %vm804 = vweird.f32 %v505
        %vm805 = vweird.f32 %v798
        %vm806 = vmor %vm804, %vm805
        %v807 = vsel %vm806, %v798, %v803
        %v808 = vrsqrt.pop %v506
        %v809 = vmul.f32 %v808, %v506
        %v810 = vmul.f32 %v809, %v808
        %v811 = vmul.f32 0.5, %v810
        %v812 = vsub.f32 1.5, %v811
        %v813 = vmul.f32 %v808, %v812
        %vm814 = vweird.f32 %v506
        %vm815 = vweird.f32 %v808
        %vm816 = vmor %vm814, %vm815
        %v817 = vsel %vm816, %v808, %v813
        %v818 = vrsqrt.pop %v507
        %v819 = vmul.f32 %v818, %v507
        %v820 = vmul.f32 %v819, %v818
        %v821 = vmul.f32 0.5, %v820
        %v822 = vsub.f32 1.5, %v821
        %v823 = vmul.f32 %v818, %v822
        %vm824 = vweird.f32 %v507
        %vm825 = vweird.f32 %v818
        %vm826 = vmor %vm824, %vm825
        %v827 = vsel %vm826, %v818, %v823
        %v828 = vmul.f32 %v252, %v517
        %v829 = vmul.f32 %v253, %v517
        %v830 = vmul.f32 %v254, %v527
        %v831 = vmul.f32 %v255, %v527
        %v832 = vmul.f32 %v256, %v537
        %v833 = vmul.f32 %v257, %v537
        %v834 = vmul.f32 %v258, %v547
        %v835 = vmul.f32 %v259, %v547
        %v836 = vmul.f32 %v260, %v557
        %v837 = vmul.f32 %v261, %v557
        %v838 = vmul.f32 %v262, %v567
        %v839 = vmul.f32 %v263, %v567
        %v840 = vmul.f32 %v264, %v577
        %v841 = vmul.f32 %v265, %v577
        %v842 = vmul.f32 %v266, %v587
        %v843 = vmul.f32 %v267, %v587
        %v844 = vmul.f32 %v268, %v597
        %v845 = vmul.f32 %v269, %v597
        %v846 = vmul.f32 %v270, %v607
        %v847 = vmul.f32 %v271, %v607
        %v848 = vmul.f32 %v272, %v617
        %v849 = vmul.f32 %v273, %v617
        %v850 = vmul.f32 %v274, %v627
        %v851 = vmul.f32 %v275, %v627
        %v852 = vmul.f32 %v276, %v637
        %v853 = vmul.f32 %v277, %v637
        %v854 = vmul.f32 %v278, %v647
        %v855 = vmul.f32 %v279, %v647
        %v856 = vmul.f32 %v280, %v657
        %v857 = vmul.f32 %v281, %v657
        %v858 = vmul.f32 %v282, %v667
        %v859 = vmul.f32 %v283, %v667
        %v860 = vmul.f32 %v284, %v677
        %v861 = vmul.f32 %v285, %v677
        %v862 = vmul.f32 %v286, %v687
        %v863 = vmul.f32 %v287, %v687
        %v864 = vmul.f32 %v288, %v697
        %v865 = vmul.f32 %v289, %v697
        %v866 = vmul.f32 %v290, %v707
        %v867 = vmul.f32 %v291, %v707
        %v868 = vmul.f32 %v292, %v717
        %v869 = vmul.f32 %v293, %v717
        %v870 = vmul.f32 %v294, %v727
        %v871 = vmul.f32 %v295, %v727
        %v872 = vmul.f32 %v296, %v737
        %v873 = vmul.f32 %v297, %v737
        %v874 = vmul.f32 %v298, %v747
        %v875 = vmul.f32 %v299, %v747
        %v876 = vmul.f32 %v300, %v757
        %v877 = vmul.f32 %v301, %v757
        %v878 = vmul.f32 %v302, %v767
        %v879 = vmul.f32 %v303, %v767
        %v880 = vmul.f32 %v304, %v777
        %v881 = vmul.f32 %v305, %v777
        %v882 = vmul.f32 %v306, %v787
        %v883 = vmul.f32 %v307, %v787
        %v884 = vmul.f32 %v308, %v797
        %v885 = vmul.f32 %v309, %v797
        %v886 = vmul.f32 %v310, %v807
        %v887 = vmul.f32 %v311, %v807
        %v888 = vmul.f32 %v312, %v817
        %v889 = vmul.f32 %v313, %v817
        %v890 = vmul.f32 %v314, %v827
        %v891 = vmul.f32 %v315, %v827
        %v892 = vld [vmem:[#allocation3] sm:$0xff]
        %v893 = vld [vmem:[#allocation3 + $0x8] sm:$0xff]
        %v894 = vld [vmem:[#allocation3 + $0x10] sm:$0xff]
        %v895 = vld [vmem:[#allocation3 + $0x18] sm:$0xff]
        %896 = vmatpush.xpose.msra.mxu0 %v858
        %897 = vmatpush.xpose.msra.mxu0 %v856
        %898 = vmatpush.xpose.msra.mxu0 %v854
        %899 = vmatpush.xpose.msra.mxu0 %v852
        %900 = vmatpush.xpose.msra.mxu0 %v850
        %901 = vmatpush.xpose.msra.mxu0 %v848
        %902 = vmatpush.xpose.msra.mxu0 %v846
        %903 = vmatpush.xpose.msra.mxu0 %v844
        %904 = vmatpush.xpose.msra.mxu0 %v842
        %905 = vmatpush.xpose.msra.mxu0 %v840
        %906 = vmatpush.xpose.msra.mxu0 %v838
        %907 = vmatpush.xpose.msra.mxu0 %v836
        %908 = vmatpush.xpose.msra.mxu0 %v834
        %909 = vmatpush.xpose.msra.mxu0 %v832
        %910 = vmatpush.xpose.msra.mxu0 %v830
        %911 = vmatpush.xpose.msra.mxu0 %v828
        %912 = vmatmul.f32.gmra.mxu0 %v892
        %v913 = vpop.f32.mrf.mxu0
        %v914 = vadd.f32 0.0, %v913
        %915 = vmatmul.f32.gmra.mxu0 %v894
        %v916 = vpop.f32.mrf.mxu0
        %v917 = vadd.f32 0.0, %v916
        %918 = vdwg.mxu0
        %919 = vmatpush.xpose.msra.mxu0 %v859
        %920 = vmatpush.xpose.msra.mxu0 %v857
        %921 = vmatpush.xpose.msra.mxu0 %v855
        %922 = vmatpush.xpose.msra.mxu0 %v853
        %923 = vmatpush.xpose.msra.mxu0 %v851
        %924 = vmatpush.xpose.msra.mxu0 %v849
        %925 = vmatpush.xpose.msra.mxu0 %v847
        %926 = vmatpush.xpose.msra.mxu0 %v845
        %927 = vmatpush.xpose.msra.mxu0 %v843
        %928 = vmatpush.xpose.msra.mxu0 %v841
        %929 = vmatpush.xpose.msra.mxu0 %v839
        %930 = vmatpush.xpose.msra.mxu0 %v837
        %931 = vmatpush.xpose.msra.mxu0 %v835
        %932 = vmatpush.xpose.msra.mxu0 %v833
        %933 = vmatpush.xpose.msra.mxu0 %v831
        %934 = vmatpush.xpose.msra.mxu0 %v829
        %935 = vmatmul.f32.gmra.mxu0 %v893
        %v936 = vpop.f32.mrf.mxu0
        %v937 = vadd.f32 %v914, %v936
        %938 = vmatmul.f32.gmra.mxu0 %v895
        %v939 = vpop.f32.mrf.mxu0
        %v940 = vadd.f32 %v917, %v939
        %941 = vdwg.mxu0
        %942 = vmatpush.xpose.msra.mxu0 %v890
        %943 = vmatpush.xpose.msra.mxu0 %v888
        %944 = vmatpush.xpose.msra.mxu0 %v886
        %945 = vmatpush.xpose.msra.mxu0 %v884
        %946 = vmatpush.xpose.msra.mxu0 %v882
        %947 = vmatpush.xpose.msra.mxu0 %v880
        %948 = vmatpush.xpose.msra.mxu0 %v878
        %949 = vmatpush.xpose.msra.mxu0 %v876
        %950 = vmatpush.xpose.msra.mxu0 %v874
        %951 = vmatpush.xpose.msra.mxu0 %v872
        %952 = vmatpush.xpose.msra.mxu0 %v870
        %953 = vmatpush.xpose.msra.mxu0 %v868
        %954 = vmatpush.xpose.msra.mxu0 %v866
        %955 = vmatpush.xpose.msra.mxu0 %v864
        %956 = vmatpush.xpose.msra.mxu0 %v862
        %957 = vmatpush.xpose.msra.mxu0 %v860
        %958 = vmatmul.f32.gmra.mxu0 %v892
        %v959 = vpop.f32.mrf.mxu0
        %v960 = vadd.f32 0.0, %v959
        %961 = vmatmul.f32.gmra.mxu0 %v894
        %v962 = vpop.f32.mrf.mxu0
        %v963 = vadd.f32 0.0, %v962
        %964 = vdwg.mxu0
        %965 = vmatpush.xpose.msra.mxu0 %v891
        %966 = vmatpush.xpose.msra.mxu0 %v889
        %967 = vmatpush.xpose.msra.mxu0 %v887
        %968 = vmatpush.xpose.msra.mxu0 %v885
        %969 = vmatpush.xpose.msra.mxu0 %v883
        %970 = vmatpush.xpose.msra.mxu0 %v881
        %971 = vmatpush.xpose.msra.mxu0 %v879
        %972 = vmatpush.xpose.msra.mxu0 %v877
        %973 = vmatpush.xpose.msra.mxu0 %v875
        %974 = vmatpush.xpose.msra.mxu0 %v873
        %975 = vmatpush.xpose.msra.mxu0 %v871
        %976 = vmatpush.xpose.msra.mxu0 %v869
        %977 = vmatpush.xpose.msra.mxu0 %v867
        %978 = vmatpush.xpose.msra.mxu0 %v865
        %979 = vmatpush.xpose.msra.mxu0 %v863
        %980 = vmatpush.xpose.msra.mxu0 %v861
        %981 = vmatmul.f32.gmra.mxu0 %v893
        %v982 = vpop.f32.mrf.mxu0
        %v983 = vadd.f32 %v960, %v982
        %984 = vmatmul.f32.gmra.mxu0 %v895
        %v985 = vpop.f32.mrf.mxu0
        %v986 = vadd.f32 %v963, %v985
        %987 = vdwg.mxu0
        %v988 = vld [vmem:[#allocation2] sm:$0xff]
        %v989 = vld [vmem:[#allocation2 + $0x8] sm:$0xff]
        %991 = vset.pattern.permute.xlu0 0
        %992 = vperm.xlu0 %991, %v988
        %v993 = vpop.permute.xlu0 %992
        %996 = vset.pattern.permute.xlu0 0
        %997 = vperm.xlu0 %996, %v989
        %v998 = vpop.permute.xlu0 %997
        %v1000 = vmul.f32 %v937, %v993
        %v1001 = vmul.f32 %v983, %v993
        %v1002 = vmul.f32 %v940, %v998
        %v1003 = vmul.f32 %v986, %v998
        %1004 = vst [vmem:[%s204] sm:$0xff] %v1000
        %1005 = vst [vmem:[%s204 + $0x8] sm:$0xff] %v1001
        %1006 = vst [vmem:[%s204 + $0x10] sm:$0xff] %v1002
        %1007 = vst [vmem:[%s204 + $0x18] sm:$0xff] %v1003
        %s1008 = sand.u32 %s94, 1
        %s1009 = scalar_lea.sflag [#allocation5], %s1008
        %s1010 = sand.u32 %s94, 1
        %s1011 = smul.addr %s1010, 32
        %s1012 = scalar_lea.vmem [#allocation8], %s1011
        // Predicated region
        $region41: #{tpu_custom_call.1} parent=27 // pred_check
          %p1013 = pneg %p104
        $region42: #{tpu_custom_call.1} parent=27 // pred_check_branch
          %1015 = sbr.rel (%p1013) target = $region44
        $region43: #{tpu_custom_call.1} parent=27 // pred_region
          %s1016 = smul.u32 2, %s24
          %s1017 = smul.u32 2, %s25
          %1019 = vsyncadd %s1009, 0
          %s1020 = smul.addr %s1016, 4
          %s1021 = sadd.s32 %s1017, %s1020
          %s1022 = smul.addr %s1021, 8
          %s1023 = scalar_lea.hbm %s2, %s1022
          %s1024 = sshll.u32 %s1012, 4
          %s1025 = int_to_ptr.vmem [resolvable:$true] %s1024
          %s1026 = sshll.u32 %s1023, 4
          %s1027 = int_to_ptr.hbm [resolvable:$true] %s1026
          %1032 = dma.vmem_to_hbm [thread:$0]  %s1025, 512, %s1027, %s1009, 256, 512, 16
        $region44: #{tpu_custom_call.1} parent=27 // pred_fallthru
          _
      $region28: #{tpu_custom_call.1} parent=5 // pred_fallthru
        _
      %p1033 = scmp.le.s32.totalorder 2, %s15
      // Predicated region
      $region45: #{tpu_custom_call.1} parent=5 // pred_check
        %p1034 = pneg %p1033
      $region46: #{tpu_custom_call.1} parent=5 // pred_check_branch
        %1036 = sbr.rel (%p1034) target = $region48
      $region47: #{tpu_custom_call.1} parent=5 // pred_region
        %s1037 = ssub.s32 %s15, 2
        // Predicated region
        $region49: #{tpu_custom_call.1} parent=47 // pred_check
          %p1038 = pneg %p110
        $region50: #{tpu_custom_call.1} parent=47 // pred_check_branch
          %1040 = sbr.rel (%p1038) target = $region52
        $region51: #{tpu_custom_call.1} parent=47 // pred_region
          %s1041 = sand.u32 %s95, 1
          %s1042 = scalar_lea.sflag [#allocation5], %s1041
          %s1043 = sand.u32 %s95, 1
          %s1044 = smul.addr %s1043, 32
          %s1045 = scalar_lea.vmem [#allocation8], %s1044
          %1047 = dma.done %s1042, 512
        $region52: #{tpu_custom_call.1} parent=47 // pred_fallthru
          _
      $region48: #{tpu_custom_call.1} parent=5 // pred_fallthru
        _
    $region6: #{tpu_custom_call.1} parent=1 // loop_footer
      %s19 = sadd.s32 1, %s15
    $region7: #{tpu_custom_call.1} parent=1 // loop_footer_branch
      %14 = sbr.rel target = $region3
    $region8: #{tpu_custom_call.1} parent=1 // loop_exit
      _
    %1048 = vsyncpa [#allocation4], 1
    %s1049 = scalar_lea.sflag [#allocation4], 1
    %1050 = vsyncpa %s1049, 1
    %1051 = vsyncpa [#allocation7], 1
    %s1052 = scalar_lea.sflag [#allocation7], 1
    %1053 = vsyncpa %s1052, 1
    %1054 = vsyncpa [#allocation5], 1
    %s1055 = scalar_lea.sflag [#allocation5], 1
    %1056 = vsyncpa %s1055, 1

</llo_original>
